<compile_context>
chip_gen: v7x
topology: tpu7x:2x2x1
jax: 0.10.0
libtpu: 0.0.40
codegen_flags: <defaults>
</compile_context>

<pallas_src>
import functools

import jax
import jax.numpy as jnp
from jax.experimental import pallas as pl
from jax.experimental.pallas import tpu as pltpu


# Padded negative rows get this value: distance >> margin + positive, so
# relu(margin + positive - d) == 0 exactly (even if it saturates to +inf in a
# narrow storage dtype, the result is -inf -> relu -> 0).
_NEG_PAD_SENTINEL = 1e8


def _round_up(x, m):
    return ((x + m - 1) // m) * m


def _quadruplet_kernel(q_ref, pos_ref, neg_ref, oneg_ref,
                       t1_ref, t2_ref,
                       c1_scr, c2_scr,
                       *, margin_1, margin_2, use_min, lazy):
    n_idx = pl.program_id(2)

    # ---- per-(split, B-tile) init: runs only on the first N step ------------
    @pl.when(n_idx == 0)
    def _init():
        # best positive distance (exact, matches the reference)
        pd = jnp.sum(jnp.square((pos_ref[...] - q_ref[...]).astype(jnp.float32)),
                     axis=2)                                     # (Bt, P)
        if use_min:
            best = jnp.min(pd, axis=1, keepdims=True)            # (Bt, 1)
        else:
            best = jnp.max(pd, axis=1, keepdims=True)
        # fold margins into per-B-tile constants
        c1_scr[...] = margin_1 + best
        c2_scr[...] = margin_2 + best
        # loss accumulators live in the (N-resident) output blocks
        t1_ref[...] = jnp.zeros_like(t1_ref)
        t2_ref[...] = jnp.zeros_like(t2_ref)

    # ---- per-N-tile body (lane-dense tail: last dim is Nt) -------------------
    neg = neg_ref[...]                                           # (Bt, Nt, D)
    # subtract in native dtype, square/accumulate in f32
    d_q = jnp.sum(jnp.square((neg - q_ref[...]).astype(jnp.float32)),
                  axis=2)                                        # (Bt, Nt)
    d_o = jnp.sum(jnp.square((neg - oneg_ref[...]).astype(jnp.float32)),
                  axis=2)                                        # (Bt, Nt)

    l1 = jnp.maximum(c1_scr[...] - d_q, 0.0)                     # (Bt, Nt)
    l2 = jnp.maximum(c2_scr[...] - d_o, 0.0)
    # Padded negatives were sentinel-filled in the wrapper -> l == 0 there, so
    # no in-kernel mask is needed for either sum or max accumulation.

    if lazy:
        t1_ref[...] = jnp.maximum(t1_ref[...], jnp.max(l1, axis=1, keepdims=True))
        t2_ref[...] = jnp.maximum(t2_ref[...], jnp.max(l2, axis=1, keepdims=True))
    else:
        t1_ref[...] = t1_ref[...] + jnp.sum(l1, axis=1, keepdims=True)
        t2_ref[...] = t2_ref[...] + jnp.sum(l2, axis=1, keepdims=True)


def quadruplet_loss(q_vec, pos_vecs, neg_vecs, other_neg, *,
                    margin_1, margin_2,
                    use_min=False, lazy=False, ignore_zero_loss=False,
                    b_tile=None, n_tile=None):
    """Pallas TPU implementation of QuadrupletLoss.forward. Returns scalar f32."""
    B, P, D = pos_vecs.shape
    N = neg_vecs.shape[1]
    itemsize = jnp.dtype(neg_vecs.dtype).itemsize
    # dtype-dependent sublane multiple: 8 (f32), 16 (bf16), 32 (int8/fp8)
    sub = max(8, 32 // max(1, itemsize))

    # ---- tile sizing ---------------------------------------------------------
    if b_tile is None:
        b_tile = B if B <= 8 else 8
    B_pad = _round_up(B, b_tile)
    b_progs = B_pad // b_tile

    if n_tile is None:
        # ~4 MiB neg tile (double-buffered -> 8 MiB): big enough to amortize the
        # ~0.35 us per-grid-step overhead, small enough that all live f32
        # temporaries stay well under the explicit 48 MiB VMEM limit (v7x-safe).
        bytes_per_row = max(1, b_tile * D * itemsize)
        n_tile = max(sub, min(4096, (4 * 1024 * 1024) // bytes_per_row))
    n_tile = int(n_tile)
    if n_tile >= 128:
        n_tile = (n_tile // 128) * 128   # keep the (Bt, Nt) tail lane-dense
    n_tile = _round_up(n_tile, sub)
    n_tile = min(n_tile, _round_up(N, sub))

    # Split the N reduction into 2 parallel partials when the batch axis alone
    # cannot feed both v7x TensorCores; harmless (sequential) elsewhere.
    n_split = 2 if (b_progs < 2 and _round_up(N, n_tile) // n_tile >= 2) else 1
    N_pad = _round_up(N, n_tile * n_split)
    n_steps = N_pad // (n_tile * n_split)   # N steps per split

    # ---- padding -------------------------------------------------------------
    if B_pad != B:
        pad_b = ((0, B_pad - B), (0, 0), (0, 0))
        q_vec = jnp.pad(q_vec, pad_b)
        pos_vecs = jnp.pad(pos_vecs, pad_b)
        neg_vecs = jnp.pad(neg_vecs, pad_b)
        other_neg = jnp.pad(other_neg, pad_b)
    if N_pad != N:
        neg_vecs = jnp.pad(neg_vecs, ((0, 0), (0, N_pad - N), (0, 0)),
                           constant_values=_NEG_PAD_SENTINEL)

    grid = (n_split, b_progs, n_steps)

    kernel = functools.partial(
        _quadruplet_kernel,
        margin_1=float(margin_1), margin_2=float(margin_2),
        use_min=bool(use_min), lazy=bool(lazy))

    t1, t2 = pl.pallas_call(
        kernel,
        out_shape=(jax.ShapeDtypeStruct((n_split, B_pad, 1), jnp.float32),
                   jax.ShapeDtypeStruct((n_split, B_pad, 1), jnp.float32)),
        grid_spec=pltpu.PrefetchScalarGridSpec(
            num_scalar_prefetch=0,
            grid=grid,
            in_specs=[
                pl.BlockSpec((b_tile, 1, D), lambda s, b, n: (b, 0, 0)),   # q
                pl.BlockSpec((b_tile, P, D), lambda s, b, n: (b, 0, 0)),   # pos
                pl.BlockSpec((b_tile, n_tile, D),
                             lambda s, b, n: (b, s * n_steps + n, 0)),     # neg
                pl.BlockSpec((b_tile, 1, D), lambda s, b, n: (b, 0, 0)),   # other_neg
            ],
            out_specs=(
                pl.BlockSpec((None, b_tile, 1), lambda s, b, n: (s, b, 0)),  # t1
                pl.BlockSpec((None, b_tile, 1), lambda s, b, n: (s, b, 0)),  # t2
            ),
            scratch_shapes=[
                pltpu.VMEM((b_tile, 1), jnp.float32),   # margin_1 + positive
                pltpu.VMEM((b_tile, 1), jnp.float32),   # margin_2 + positive
            ],
        ),
        compiler_params=pltpu.CompilerParams(
            dimension_semantics=("parallel", "parallel", "arbitrary"),
            vmem_limit_bytes=48 * 1024 * 1024),
    )(q_vec, pos_vecs, neg_vecs, other_neg)

    # ---- tiny final reduction over the true batch (plain JAX) ----------------
    # TODO(synk): the O(B) scalar epilogue (mean / hard-triplet count) stays
    # outside the kernel.
    if lazy:
        t1 = jnp.max(t1, axis=0)   # combine per-split partial maxima
        t2 = jnp.max(t2, axis=0)
    else:
        t1 = jnp.sum(t1, axis=0)   # combine per-split partial sums
        t2 = jnp.sum(t2, axis=0)
    t1 = t1[:B, 0]
    t2 = t2[:B, 0]
    if ignore_zero_loss:
        triplet_loss = jnp.sum(t1) / (jnp.sum((t1 > 1e-16).astype(jnp.float32)) + 1e-16)
        second_loss = jnp.sum(t2) / (jnp.sum((t2 > 1e-16).astype(jnp.float32)) + 1e-16)
    else:
        triplet_loss = jnp.mean(t1)
        second_loss = jnp.mean(t2)
    return triplet_loss + second_loss


def _reference(q_vec, pos_vecs, neg_vecs, other_neg, *,
               margin_1, margin_2, use_min=False, lazy=False,
               ignore_zero_loss=False):
    """Plain-JAX reference mirroring the PyTorch semantics."""
    q = q_vec.astype(jnp.float32)
    pos = pos_vecs.astype(jnp.float32)
    neg = neg_vecs.astype(jnp.float32)
    oneg = other_neg.astype(jnp.float32)

    pos_dist = jnp.sum((pos - q) ** 2, axis=2)
    positive = jnp.min(pos_dist, axis=1) if use_min else jnp.max(pos_dist, axis=1)
    positive = positive[:, None]

    loss1 = jnp.clip(margin_1 + positive - jnp.sum((neg - q) ** 2, axis=2), 0.0)
    loss2 = jnp.clip(margin_2 + positive - jnp.sum((neg - oneg) ** 2, axis=2), 0.0)

    t1 = jnp.max(loss1, axis=1) if lazy else jnp.sum(loss1, axis=1)
    t2 = jnp.max(loss2, axis=1) if lazy else jnp.sum(loss2, axis=1)

    if ignore_zero_loss:
        t1 = jnp.sum(t1) / (jnp.sum((t1 > 1e-16).astype(jnp.float32)) + 1e-16)
        t2 = jnp.sum(t2) / (jnp.sum((t2 > 1e-16).astype(jnp.float32)) + 1e-16)
    else:
        t1 = jnp.mean(t1)
        t2 = jnp.mean(t2)
    return t1 + t2


if __name__ == "__main__":
    key = jax.random.PRNGKey(0)
    margin_1, margin_2 = 0.5, 0.2

    # --- case 1: small default shapes, default flags -------------------------
    B, P, N, D = 2, 2, 4, 32
    k1, k2, k3, k4, k5 = jax.random.split(key, 5)
    q_vec = jax.random.normal(k1, (B, 1, D), dtype=jnp.float32)
    pos_vecs = jax.random.normal(k2, (B, P, D), dtype=jnp.float32)
    neg_vecs = jax.random.normal(k3, (B, N, D), dtype=jnp.float32)
    other_neg = jax.random.normal(k4, (B, 1, D), dtype=jnp.float32)

    loss = quadruplet_loss(q_vec, pos_vecs, neg_vecs, other_neg,
                           margin_1=margin_1, margin_2=margin_2)
    loss = jax.block_until_ready(loss)
    ref = _reference(q_vec, pos_vecs, neg_vecs, other_neg,
                     margin_1=margin_1, margin_2=margin_2)
    assert jnp.allclose(loss, ref, atol=1e-4, rtol=1e-4), (loss, ref)

    # --- case 2: unaligned N, multi N tiles + split path, other flag combo ---
    B2, P2, N2, D2 = 4, 2, 20, 64
    q2 = jax.random.normal(k5, (B2, 1, D2), dtype=jnp.float32)
    p2 = jax.random.normal(k2, (B2, P2, D2), dtype=jnp.float32)
    n2 = jax.random.normal(k3, (B2, N2, D2), dtype=jnp.float32)
    o2 = jax.random.normal(k4, (B2, 1, D2), dtype=jnp.float32)

    loss2 = quadruplet_loss(q2, p2, n2, o2, margin_1=margin_1, margin_2=margin_2,
                            use_min=True, lazy=True, ignore_zero_loss=True,
                            n_tile=8)
    loss2 = jax.block_until_ready(loss2)
    ref2 = _reference(q2, p2, n2, o2, margin_1=margin_1, margin_2=margin_2,
                      use_min=True, lazy=True, ignore_zero_loss=True)
    assert jnp.allclose(loss2, ref2, atol=1e-4, rtol=1e-4), (loss2, ref2)

    # --- case 3: batch > b_tile (batch padding), multiple B programs ---------
    B3, P3, N3, D3 = 10, 3, 40, 32
    q3 = jax.random.normal(k1, (B3, 1, D3), dtype=jnp.float32)
    p3 = jax.random.normal(k2, (B3, P3, D3), dtype=jnp.float32)
    n3 = jax.random.normal(k3, (B3, N3, D3), dtype=jnp.float32)
    o3 = jax.random.normal(k4, (B3, 1, D3), dtype=jnp.float32)

    loss3 = quadruplet_loss(q3, p3, n3, o3, margin_1=margin_1, margin_2=margin_2)
    loss3 = jax.block_until_ready(loss3)
    ref3 = _reference(q3, p3, n3, o3, margin_1=margin_1, margin_2=margin_2)
    assert jnp.allclose(loss3, ref3, atol=1e-4, rtol=1e-4), (loss3, ref3)

    print("KERNEL_OK")
</pallas_src>

<mosaic_0001>
module attributes {stable_mosaic.version = 11 : i64} {
  func.func @_quadruplet_kernel(%arg0: i32, %arg1: i32, %arg2: i32, %arg3: memref<2x1x32xf32, #tpu.memory_space<vmem>>, %arg4: memref<2x2x32xf32, #tpu.memory_space<vmem>>, %arg5: memref<2x8x32xf32, #tpu.memory_space<vmem>>, %arg6: memref<2x1x32xf32, #tpu.memory_space<vmem>>, %arg7: memref<1x2x1xf32, #tpu.memory_space<vmem>>, %arg8: memref<1x2x1xf32, #tpu.memory_space<vmem>>, %arg9: memref<2x1xf32, #tpu.memory_space<vmem>>, %arg10: memref<2x1xf32, #tpu.memory_space<vmem>>) attributes {dimension_semantics = [#tpu.dimension_semantics<parallel>, #tpu.dimension_semantics<parallel>, #tpu.dimension_semantics<arbitrary>], iteration_bounds = array<i64: 1, 1, 1>, scalar_prefetch = 0 : i64, scratch_operands = 2 : i64, tpu.core_type = #tpu.core_type<tc>, window_params = [{transform_indices = @transform_0, window_bounds = array<i64: 2, 1, 32>}, {transform_indices = @transform_1, window_bounds = array<i64: 2, 2, 32>}, {transform_indices = @transform_2, window_bounds = array<i64: 2, 8, 32>}, {transform_indices = @transform_3, window_bounds = array<i64: 2, 1, 32>}, {transform_indices = @transform_4, window_bounds = array<i64: 1, 2, 1>}, {transform_indices = @transform_5, window_bounds = array<i64: 1, 2, 1>}]} {
    %c0_i32 = arith.constant 0 : i32
    %0 = arith.cmpi eq, %arg2, %c0_i32 : i32
    %1 = arith.extui %0 : i1 to i32
    %c0_i32_0 = arith.constant 0 : i32
    %2 = arith.cmpi ne, %1, %c0_i32_0 : i32
    scf.if %2 {
      %c0_30 = arith.constant 0 : index
      %c0_31 = arith.constant 0 : index
      %c0_32 = arith.constant 0 : index
      %40 = vector.load %arg4[%c0_30, %c0_31, %c0_32] : memref<2x2x32xf32, #tpu.memory_space<vmem>>, vector<2x2x32xf32>
      %c0_33 = arith.constant 0 : index
      %c0_34 = arith.constant 0 : index
      %c0_35 = arith.constant 0 : index
      %41 = vector.load %arg3[%c0_33, %c0_34, %c0_35] : memref<2x1x32xf32, #tpu.memory_space<vmem>>, vector<2x1x32xf32>
      %42 = vector.broadcast %41 : vector<2x1x32xf32> to vector<2x2x32xf32>
      %43 = arith.subf %40, %42 : vector<2x2x32xf32>
      %44 = arith.mulf %43, %43 : vector<2x2x32xf32>
      %cst_36 = arith.constant dense<0.000000e+00> : vector<2x2xf32>
      %45 = vector.multi_reduction <add>, %44, %cst_36 [2] : vector<2x2x32xf32> to vector<2x2xf32>
      %cst_37 = arith.constant dense<0xFF800000> : vector<2xf32>
      %46 = vector.multi_reduction <maximumf>, %45, %cst_37 [1] : vector<2x2xf32> to vector<2xf32>
      %47 = vector.shape_cast %46 : vector<2xf32> to vector<2x1xf32>
      %cst_38 = arith.constant 5.000000e-01 : f32
      %48 = vector.broadcast %cst_38 : f32 to vector<2x1xf32>
      %49 = arith.addf %48, %47 : vector<2x1xf32>
      %c0_39 = arith.constant 0 : index
      %c0_40 = arith.constant 0 : index
      %50 = vector.load %arg9[%c0_39, %c0_40] : memref<2x1xf32, #tpu.memory_space<vmem>>, vector<2x1xf32>
      tpu.vector_store %arg9[%c0_39, %c0_40], %49 {strides = array<i32>} : memref<2x1xf32, #tpu.memory_space<vmem>>, vector<2x1xf32>,
      %cst_41 = arith.constant 2.000000e-01 : f32
      %51 = vector.broadcast %cst_41 : f32 to vector<2x1xf32>
      %52 = arith.addf %51, %47 : vector<2x1xf32>
      %c0_42 = arith.constant 0 : index
      %c0_43 = arith.constant 0 : index
      %53 = vector.load %arg10[%c0_42, %c0_43] : memref<2x1xf32, #tpu.memory_space<vmem>>, vector<2x1xf32>
      tpu.vector_store %arg10[%c0_42, %c0_43], %52 {strides = array<i32>} : memref<2x1xf32, #tpu.memory_space<vmem>>, vector<2x1xf32>,
      %cst_44 = arith.constant 0.000000e+00 : f32
      %54 = vector.broadcast %cst_44 : f32 to vector<2x1xf32>
      %c0_45 = arith.constant 0 : index
      %c0_46 = arith.constant 0 : index
      %c0_47 = arith.constant 0 : index
      %55 = vector.load %arg7[%c0_45, %c0_46, %c0_47] : memref<1x2x1xf32, #tpu.memory_space<vmem>>, vector<1x2x1xf32>
      %56 = vector.shape_cast %55 : vector<1x2x1xf32> to vector<2x1xf32>
      %57 = vector.shape_cast %54 : vector<2x1xf32> to vector<1x2x1xf32>
      tpu.vector_store %arg7[%c0_45, %c0_46, %c0_47], %57 {strides = array<i32>} : memref<1x2x1xf32, #tpu.memory_space<vmem>>, vector<1x2x1xf32>,
      %cst_48 = arith.constant 0.000000e+00 : f32
      %58 = vector.broadcast %cst_48 : f32 to vector<2x1xf32>
      %c0_49 = arith.constant 0 : index
      %c0_50 = arith.constant 0 : index
      %c0_51 = arith.constant 0 : index
      %59 = vector.load %arg8[%c0_49, %c0_50, %c0_51] : memref<1x2x1xf32, #tpu.memory_space<vmem>>, vector<1x2x1xf32>
      %60 = vector.shape_cast %59 : vector<1x2x1xf32> to vector<2x1xf32>
      %61 = vector.shape_cast %58 : vector<2x1xf32> to vector<1x2x1xf32>
      tpu.vector_store %arg8[%c0_49, %c0_50, %c0_51], %61 {strides = array<i32>} : memref<1x2x1xf32, #tpu.memory_space<vmem>>, vector<1x2x1xf32>,
    } else {
    }
    %c0 = arith.constant 0 : index
    %c0_1 = arith.constant 0 : index
    %c0_2 = arith.constant 0 : index
    %3 = vector.load %arg5[%c0, %c0_1, %c0_2] : memref<2x8x32xf32, #tpu.memory_space<vmem>>, vector<2x8x32xf32>
    %c0_3 = arith.constant 0 : index
    %c0_4 = arith.constant 0 : index
    %c0_5 = arith.constant 0 : index
    %4 = vector.load %arg3[%c0_3, %c0_4, %c0_5] : memref<2x1x32xf32, #tpu.memory_space<vmem>>, vector<2x1x32xf32>
    %5 = vector.broadcast %4 : vector<2x1x32xf32> to vector<2x8x32xf32>
    %6 = arith.subf %3, %5 : vector<2x8x32xf32>
    %7 = arith.mulf %6, %6 : vector<2x8x32xf32>
    %cst = arith.constant dense<0.000000e+00> : vector<2x8xf32>
    %8 = vector.multi_reduction <add>, %7, %cst [2] : vector<2x8x32xf32> to vector<2x8xf32>
    %c0_6 = arith.constant 0 : index
    %c0_7 = arith.constant 0 : index
    %c0_8 = arith.constant 0 : index
    %9 = vector.load %arg6[%c0_6, %c0_7, %c0_8] : memref<2x1x32xf32, #tpu.memory_space<vmem>>, vector<2x1x32xf32>
    %10 = vector.broadcast %9 : vector<2x1x32xf32> to vector<2x8x32xf32>
    %11 = arith.subf %3, %10 : vector<2x8x32xf32>
    %12 = arith.mulf %11, %11 : vector<2x8x32xf32>
    %cst_9 = arith.constant dense<0.000000e+00> : vector<2x8xf32>
    %13 = vector.multi_reduction <add>, %12, %cst_9 [2] : vector<2x8x32xf32> to vector<2x8xf32>
    %c0_10 = arith.constant 0 : index
    %c0_11 = arith.constant 0 : index
    %14 = vector.load %arg9[%c0_10, %c0_11] : memref<2x1xf32, #tpu.memory_space<vmem>>, vector<2x1xf32>
    %15 = vector.broadcast %14 : vector<2x1xf32> to vector<2x8xf32>
    %16 = arith.subf %15, %8 : vector<2x8xf32>
    %cst_12 = arith.constant 0.000000e+00 : f32
    %17 = vector.broadcast %cst_12 : f32 to vector<2x8xf32>
    %18 = arith.maximumf %16, %17 : vector<2x8xf32>
    %c0_13 = arith.constant 0 : index
    %c0_14 = arith.constant 0 : index
    %19 = vector.load %arg10[%c0_13, %c0_14] : memref<2x1xf32, #tpu.memory_space<vmem>>, vector<2x1xf32>
    %20 = vector.broadcast %19 : vector<2x1xf32> to vector<2x8xf32>
    %21 = arith.subf %20, %13 : vector<2x8xf32>
    %cst_15 = arith.constant 0.000000e+00 : f32
    %22 = vector.broadcast %cst_15 : f32 to vector<2x8xf32>
    %23 = arith.maximumf %21, %22 : vector<2x8xf32>
    %c0_16 = arith.constant 0 : index
    %c0_17 = arith.constant 0 : index
    %c0_18 = arith.constant 0 : index
    %24 = vector.load %arg7[%c0_16, %c0_17, %c0_18] : memref<1x2x1xf32, #tpu.memory_space<vmem>>, vector<1x2x1xf32>
    %25 = vector.shape_cast %24 : vector<1x2x1xf32> to vector<2x1xf32>
    %cst_19 = arith.constant dense<0.000000e+00> : vector<2xf32>
    %26 = vector.multi_reduction <add>, %18, %cst_19 [1] : vector<2x8xf32> to vector<2xf32>
    %27 = vector.shape_cast %26 : vector<2xf32> to vector<2x1xf32>
    %28 = arith.addf %25, %27 : vector<2x1xf32>
    %c0_20 = arith.constant 0 : index
    %c0_21 = arith.constant 0 : index
    %c0_22 = arith.constant 0 : index
    %29 = vector.load %arg7[%c0_20, %c0_21, %c0_22] : memref<1x2x1xf32, #tpu.memory_space<vmem>>, vector<1x2x1xf32>
    %30 = vector.shape_cast %29 : vector<1x2x1xf32> to vector<2x1xf32>
    %31 = vector.shape_cast %28 : vector<2x1xf32> to vector<1x2x1xf32>
    tpu.vector_store %arg7[%c0_20, %c0_21, %c0_22], %31 {strides = array<i32>} : memref<1x2x1xf32, #tpu.memory_space<vmem>>, vector<1x2x1xf32>,
    %c0_23 = arith.constant 0 : index
    %c0_24 = arith.constant 0 : index
    %c0_25 = arith.constant 0 : index
    %32 = vector.load %arg8[%c0_23, %c0_24, %c0_25] : memref<1x2x1xf32, #tpu.memory_space<vmem>>, vector<1x2x1xf32>
    %33 = vector.shape_cast %32 : vector<1x2x1xf32> to vector<2x1xf32>
    %cst_26 = arith.constant dense<0.000000e+00> : vector<2xf32>
    %34 = vector.multi_reduction <add>, %23, %cst_26 [1] : vector<2x8xf32> to vector<2xf32>
    %35 = vector.shape_cast %34 : vector<2xf32> to vector<2x1xf32>
    %36 = arith.addf %33, %35 : vector<2x1xf32>
    %c0_27 = arith.constant 0 : index
    %c0_28 = arith.constant 0 : index
    %c0_29 = arith.constant 0 : index
    %37 = vector.load %arg8[%c0_27, %c0_28, %c0_29] : memref<1x2x1xf32, #tpu.memory_space<vmem>>, vector<1x2x1xf32>
    %38 = vector.shape_cast %37 : vector<1x2x1xf32> to vector<2x1xf32>
    %39 = vector.shape_cast %36 : vector<2x1xf32> to vector<1x2x1xf32>
    tpu.vector_store %arg8[%c0_27, %c0_28, %c0_29], %39 {strides = array<i32>} : memref<1x2x1xf32, #tpu.memory_space<vmem>>, vector<1x2x1xf32>,
    return
  }
  func.func @transform_0(%arg0: i32, %arg1: i32, %arg2: i32) -> (i32, i32, i32) {
    %c0_i32 = arith.constant 0 : i32
    %c0_i32_0 = arith.constant 0 : i32
    %c0_i32_1 = arith.constant 0 : i32
    return %arg1, %c0_i32, %c0_i32_0 : i32, i32, i32
  }
  func.func @transform_1(%arg0: i32, %arg1: i32, %arg2: i32) -> (i32, i32, i32) {
    %c0_i32 = arith.constant 0 : i32
    %c0_i32_0 = arith.constant 0 : i32
    %c0_i32_1 = arith.constant 0 : i32
    return %arg1, %c0_i32, %c0_i32_0 : i32, i32, i32
  }
  func.func @transform_2(%arg0: i32, %arg1: i32, %arg2: i32) -> (i32, i32, i32) {
    %c1_i32 = arith.constant 1 : i32
    %0 = arith.muli %arg0, %c1_i32 : i32
    %1 = arith.addi %0, %arg2 : i32
    %c0_i32 = arith.constant 0 : i32
    %c0_i32_0 = arith.constant 0 : i32
    return %arg1, %1, %c0_i32 : i32, i32, i32
  }
  func.func @transform_3(%arg0: i32, %arg1: i32, %arg2: i32) -> (i32, i32, i32) {
    %c0_i32 = arith.constant 0 : i32
    %c0_i32_0 = arith.constant 0 : i32
    %c0_i32_1 = arith.constant 0 : i32
    return %arg1, %c0_i32, %c0_i32_0 : i32, i32, i32
  }
  func.func @transform_4(%arg0: i32, %arg1: i32, %arg2: i32) -> (i32, i32, i32) {
    %c0_i32 = arith.constant 0 : i32
    %c0_i32_0 = arith.constant 0 : i32
    return %arg0, %arg1, %c0_i32 : i32, i32, i32
  }
  func.func @transform_5(%arg0: i32, %arg1: i32, %arg2: i32) -> (i32, i32, i32) {
    %c0_i32 = arith.constant 0 : i32
    %c0_i32_0 = arith.constant 0 : i32
    return %arg0, %arg1, %c0_i32 : i32, i32, i32
  }
}

</mosaic_0001>

<llo_original>
// kernel: tpu_custom_call.1
$region0: #{tpu_custom_call.1}
  #allocation0 [shape = 'u32[]', space=smem, size = 0x4, offset = 0x4, fixed_abs, tag = 'smem constant byte address 0x4 - core index']
  #allocation1 [shape = 'u32[144,128]{1,0:T(1,128)}', space=vmem, size = 0x12000, scoped, tag = 'internal scratch']
  #allocation2 [shape = 'f32[2,1]{1,0:T(2,128)}', space=vmem, size = 0x400, scoped, tag = 'scratch operand']
  #allocation3 [shape = 'f32[2,1]{1,0:T(2,128)}', space=vmem, size = 0x400, scoped, tag = 'scratch operand']
  %s0 = inlined_call_operand.hbm [shape: f32[2,1,32], index: 0, kind: input, shape index: {}]
  %s1 = inlined_call_operand.hbm [shape: f32[2,2,32], index: 1, kind: input, shape index: {}]
  %s2 = inlined_call_operand.hbm [shape: f32[2,8,32], index: 2, kind: input, shape index: {}]
  %s3 = inlined_call_operand.vmem [shape: f32[2,1,32], index: 3, kind: input, shape index: {}]
  %s4 = inlined_call_operand.vmem [shape: f32[1,2,1], index: 4, kind: output, shape index: {0}]
  %s5 = inlined_call_operand.vmem [shape: f32[1,2,1], index: 5, kind: output, shape index: {1}]
  %6 = xla_tuple %s4, %s5
  %s7 = sld [smem:[#allocation0]]
  $region50: #{tpu_custom_call.1} parent=0
    _
  %s9 = ssub.s32 1, %s7
  %s10 = scalar_select 0, %s9, %s7
  $region1: #{tpu_custom_call.1} parent=0
    #allocation4 [shape = 'u8[1024]{0}', space=vmem, size = 0x400, scoped, tag = 'input window, operand 0, single buffered']
    #allocation5 [shape = 's32[1]{0}', space=sflag, size = 0x4, scoped, tag = 'scoped memory for tpu_custom_call.1']
    #allocation6 [shape = 'u8[2048]{0}', space=vmem, size = 0x800, scoped, tag = 'input window, operand 1, single buffered']
    #allocation7 [shape = 's32[1]{0}', space=sflag, size = 0x4, scoped, tag = 'scoped memory for tpu_custom_call.1']
    #allocation8 [shape = 'u8[8192]{0}', space=vmem, size = 0x2000, scoped, tag = 'input window, operand 2, single buffered']
    %11 = vsyncpa [#allocation5], 0
    %12 = vsyncpa [#allocation7], 0
    // Predicated region
    $region2: #{tpu_custom_call.1} parent=1 // pred_check
      _
    $region3: #{tpu_custom_call.1} parent=1 // pred_check_branch
      %14 = sbr.rel (0) target = $region5
    $region4: #{tpu_custom_call.1} parent=1 // pred_region
      %s16 = ssub.s32 32, 32
      %17 = vsyncadd [#allocation5], %s16
      %s18 = sshll.u32 [#allocation4], 4
      %s19 = int_to_ptr.vmem [resolvable:$true] %s18
      %24 = dma.hbm_to_vmem [thread:$0]  %s0, 32, %s19, [#allocation5], 16, 16, 1
    $region5: #{tpu_custom_call.1} parent=1 // pred_fallthru
      _
    // Predicated region
    $region6: #{tpu_custom_call.1} parent=1 // pred_check
      _
    $region7: #{tpu_custom_call.1} parent=1 // pred_check_branch
      %26 = sbr.rel (0) target = $region9
    $region8: #{tpu_custom_call.1} parent=1 // pred_region
      %s28 = ssub.s32 64, 64
      %29 = vsyncadd [#allocation7], %s28
      %s30 = sshll.u32 [#allocation6], 4
      %s31 = int_to_ptr.vmem [resolvable:$true] %s30
      %36 = dma.hbm_to_vmem [thread:$0]  %s1, 64, %s31, [#allocation7], 32, 32, 2
    $region9: #{tpu_custom_call.1} parent=1 // pred_fallthru
      _
    // Predicated region
    $region10: #{tpu_custom_call.1} parent=1 // pred_check
      _
    $region11: #{tpu_custom_call.1} parent=1 // pred_check_branch
      %38 = sbr.rel (0) target = $region13
    $region12: #{tpu_custom_call.1} parent=1 // pred_region
      %s39 = sadd.s32 0, 0
      %s41 = ssub.s32 256, 256
      %42 = vsyncadd [#allocation7], %s41
      %s43 = smul.addr %s39, 128
      %s44 = scalar_lea.hbm %s2, %s43
      %s45 = sshll.u32 [#allocation8], 4
      %s46 = int_to_ptr.vmem [resolvable:$true] %s45
      %51 = dma.hbm_to_vmem [thread:$0]  %s44, 256, %s46, [#allocation7], 128, 128, 8
    $region13: #{tpu_custom_call.1} parent=1 // pred_fallthru
      _
    // Predicated region
    $region14: #{tpu_custom_call.1} parent=1 // pred_check
      _
    $region15: #{tpu_custom_call.1} parent=1 // pred_check_branch
      %53 = sbr.rel (0) target = $region17
    $region16: #{tpu_custom_call.1} parent=1 // pred_region
      _
    $region17: #{tpu_custom_call.1} parent=1 // pred_fallthru
      _
    // Predicated region
    $region18: #{tpu_custom_call.1} parent=1 // pred_check
      _
    $region19: #{tpu_custom_call.1} parent=1 // pred_check_branch
      %55 = sbr.rel (0) target = $region21
    $region20: #{tpu_custom_call.1} parent=1 // pred_region
      %56 = dma.done [#allocation5], 32
    $region21: #{tpu_custom_call.1} parent=1 // pred_fallthru
      _
    // Predicated region
    $region22: #{tpu_custom_call.1} parent=1 // pred_check
      _
    $region23: #{tpu_custom_call.1} parent=1 // pred_check_branch
      %58 = sbr.rel (0) target = $region25
    $region24: #{tpu_custom_call.1} parent=1 // pred_region
      %59 = dma.done [#allocation7], 64
    $region25: #{tpu_custom_call.1} parent=1 // pred_fallthru
      _
    // Predicated region
    $region26: #{tpu_custom_call.1} parent=1 // pred_check
      _
    $region27: #{tpu_custom_call.1} parent=1 // pred_check_branch
      %61 = sbr.rel (0) target = $region29
    $region28: #{tpu_custom_call.1} parent=1 // pred_region
      %62 = dma.done [#allocation7], 256
    $region29: #{tpu_custom_call.1} parent=1 // pred_fallthru
      _
    %s63 = sadd.s32 0, 0
    %p64 = scmp.eq.s32.totalorder 0, 0
    // Predicated region
    $region30: #{tpu_custom_call.1} parent=1 // pred_check
      %p65 = pneg %p64
    $region31: #{tpu_custom_call.1} parent=1 // pred_check_branch
      %67 = sbr.rel (%p65) target = $region33
    $region32: #{tpu_custom_call.1} parent=1 // pred_region
      %v68 = vld [vmem:[#allocation6] sm:$0x3]
      %v69 = vld [vmem:[#allocation6 + $0x2] sm:$0x3]
      %v70 = vld [vmem:[#allocation4] sm:$0x1]
      %v71 = vld [vmem:[#allocation4 + $0x1] sm:$0x1]
      %v74 = vlaneseq
      %v75 = vshrl.u32 %v74, 7
      %v76 = vsub.s32 0, %v75
      %v77 = vrot.slane %v70, %v76
      %v78 = vlaneseq
      %v79 = vshrl.u32 %v78, 7
      %v80 = vsub.s32 0, %v79
      %v81 = vrot.slane %v71, %v80
      %v84 = vsub.f32 %v68, %v77
      %v85 = vsub.f32 %v69, %v81
      %v86 = vmul.f32 %v84, %v84
      %v87 = vmul.f32 %v85, %v85
      %vm88 = vcmask 254976
      %v89 = vsel %vm88, %v86, 0.0
      %90 = vadd.xlane.f32.xlu0 %v89
      %v91 = vpop.xlane.xlu0 %90
      %v92 = vsel %vm88, %v87, 0.0
      %93 = vadd.xlane.f32.xlu0 %v92
      %v94 = vpop.xlane.xlu0 %93
      %v97 = vlaneseq
      %v98 = vand.u32 %v97, 127
      %v99 = vlaneseq
      %v100 = vshrl.u32 %v99, 7
      %v101 = vsub.s32 %v98, %v100
      %v102 = vrot.slane %v91, %v101
      %v103 = vlaneseq
      %v104 = vshrl.u32 %v103, 7
      %v105 = vsub.s32 %v98, %v104
      %v106 = vrot.slane %v94, %v105
      %vm107 = vcmask 1041409
      %v108 = vsel %vm107, %v106, %v102
      %vm110 = vcmask 9216
      %v111 = vsel %vm110, %v108, -inf
      %112 = vmax.xlane.f32.xlu0 %v111
      %v113 = vpop.xlane.xlu0 %112
      %v114 = vadd.f32 %v113, 0.5
      %vm115 = vcmask 1024
      %116 = vst.msk [vmem:[#allocation2] sm:$0x3] %vm115, %v114
      %v117 = vadd.f32 %v113, 0.2
      %118 = vst.msk [vmem:[#allocation3] sm:$0x3] %vm115, %v117
      %119 = vst.msk [vmem:[%s4] sm:$0x3] %vm115, 0.0
      %120 = vst.msk [vmem:[%s5] sm:$0x3] %vm115, 0.0
    $region33: #{tpu_custom_call.1} parent=1 // pred_fallthru
      _
    %v121 = vld [vmem:[#allocation8] sm:$0xff]
    %v122 = vld [vmem:[#allocation8 + $0x8] sm:$0xff]
    %v123 = vld [vmem:[#allocation4] sm:$0x1]
    %v124 = vld [vmem:[#allocation4 + $0x1] sm:$0x1]
    %v127 = vlaneseq
    %v128 = vshrl.u32 %v127, 7
    %v129 = vsub.s32 0, %v128
    %v130 = vrot.slane %v123, %v129
    %v131 = vlaneseq
    %v132 = vshrl.u32 %v131, 7
    %v133 = vsub.s32 0, %v132
    %v134 = vrot.slane %v124, %v133
    %v137 = vsub.f32 %v121, %v130
    %v138 = vsub.f32 %v122, %v134
    %v139 = vmul.f32 %v137, %v137
    %v140 = vmul.f32 %v138, %v138
    %vm141 = vcmask 261120
    %v142 = vsel %vm141, %v139, 0.0
    %143 = vadd.xlane.f32.xlu0 %v142
    %v144 = vpop.xlane.xlu0 %143
    %v145 = vsel %vm141, %v140, 0.0
    %146 = vadd.xlane.f32.xlu0 %v145
    %v147 = vpop.xlane.xlu0 %146
    %v148 = vld [vmem:[%s3] sm:$0x1]
    %v149 = vld [vmem:[%s3 + $0x1] sm:$0x1]
    %v152 = vlaneseq
    %v153 = vshrl.u32 %v152, 7
    %v154 = vsub.s32 0, %v153
    %v155 = vrot.slane %v148, %v154
    %v156 = vlaneseq
    %v157 = vshrl.u32 %v156, 7
    %v158 = vsub.s32 0, %v157
    %v159 = vrot.slane %v149, %v158
    %v162 = vsub.f32 %v121, %v155
    %v163 = vsub.f32 %v122, %v159
    %v164 = vmul.f32 %v162, %v162
    %v165 = vmul.f32 %v163, %v163
    %v166 = vsel %vm141, %v164, 0.0
    %167 = vadd.xlane.f32.xlu0 %v166
    %v168 = vpop.xlane.xlu0 %167
    %v169 = vsel %vm141, %v165, 0.0
    %170 = vadd.xlane.f32.xlu0 %v169
    %v171 = vpop.xlane.xlu0 %170
    %v172 = vld [vmem:[#allocation2] sm:$0x3]
    %174 = vset.pattern.permute.xlu0 0
    %175 = vperm.xlu0 %174, %v172
    %v176 = vpop.permute.xlu0 %175
    %v180 = vlaneseq
    %v181 = vand.u32 %v180, 127
    %v182 = vlaneseq
    %v183 = vshrl.u32 %v182, 7
    %v184 = vsub.s32 %v181, %v183
    %v185 = vrot.slane %v144, %v184
    %v186 = vlaneseq
    %v187 = vshrl.u32 %v186, 7
    %v188 = vsub.s32 %v181, %v187
    %v189 = vrot.slane %v147, %v188
    %vm190 = vcmask 1041409
    %v191 = vsel %vm190, %v189, %v185
    %v193 = vsub.f32 %v176, %v191
    %v194 = vmax.f32 %v193, 0.0
    %v195 = vld [vmem:[#allocation3] sm:$0x3]
    %197 = vset.pattern.permute.xlu0 0
    %198 = vperm.xlu0 %197, %v195
    %v199 = vpop.permute.xlu0 %198
    %v203 = vlaneseq
    %v204 = vshrl.u32 %v203, 7
    %v205 = vsub.s32 %v181, %v204
    %v206 = vrot.slane %v168, %v205
    %v207 = vlaneseq
    %v208 = vshrl.u32 %v207, 7
    %v209 = vsub.s32 %v181, %v208
    %v210 = vrot.slane %v171, %v209
    %v211 = vsel %vm190, %v210, %v206
    %v213 = vsub.f32 %v199, %v211
    %v214 = vmax.f32 %v213, 0.0
    %v215 = vld [vmem:[%s4] sm:$0x3]
    %vm216 = vcmask 58368
    %v217 = vsel %vm216, %v194, 0.0
    %218 = vadd.xlane.f32.xlu0 %v217
    %v219 = vpop.xlane.xlu0 %218
    %v220 = vadd.f32 %v215, %v219
    %vm221 = vcmask 1024
    %222 = vst.msk [vmem:[%s4] sm:$0x3] %vm221, %v220
    %v223 = vld [vmem:[%s5] sm:$0x3]
    %v224 = vsel %vm216, %v214, 0.0
    %225 = vadd.xlane.f32.xlu0 %v224
    %v226 = vpop.xlane.xlu0 %225
    %v227 = vadd.f32 %v223, %v226
    %228 = vst.msk [vmem:[%s5] sm:$0x3] %vm221, %v227
    // Predicated region
    $region34: #{tpu_custom_call.1} parent=1 // pred_check
      _
    $region35: #{tpu_custom_call.1} parent=1 // pred_check_branch
      %230 = sbr.rel (0) target = $region37
    $region36: #{tpu_custom_call.1} parent=1 // pred_region
      _
    $region37: #{tpu_custom_call.1} parent=1 // pred_fallthru
      _
    // Predicated region
    $region38: #{tpu_custom_call.1} parent=1 // pred_check
      _
    $region39: #{tpu_custom_call.1} parent=1 // pred_check_branch
      %232 = sbr.rel (0) target = $region41
    $region40: #{tpu_custom_call.1} parent=1 // pred_region
      _
    $region41: #{tpu_custom_call.1} parent=1 // pred_fallthru
      _
    // Predicated region
    $region42: #{tpu_custom_call.1} parent=1 // pred_check
      _
    $region43: #{tpu_custom_call.1} parent=1 // pred_check_branch
      %234 = sbr.rel (0) target = $region45
    $region44: #{tpu_custom_call.1} parent=1 // pred_region
      _
    $region45: #{tpu_custom_call.1} parent=1 // pred_fallthru
      _
    // Predicated region
    $region46: #{tpu_custom_call.1} parent=1 // pred_check
      _
    $region47: #{tpu_custom_call.1} parent=1 // pred_check_branch
      %236 = sbr.rel (0) target = $region49
    $region48: #{tpu_custom_call.1} parent=1 // pred_region
      _
    $region49: #{tpu_custom_call.1} parent=1 // pred_fallthru
      _
    %237 = vsyncpa [#allocation5], 1
    %238 = vsyncpa [#allocation7], 1

</llo_original>
